<compile_context>
chip_gen: v7x
topology: tpu7x:2x2x1
jax: 0.10.0
libtpu: 0.0.40
codegen_flags: <defaults>
</compile_context>

<pallas_src>
import functools
import math

import jax
import jax.numpy as jnp
from jax.experimental import pallas as pl
from jax.experimental.pallas import tpu as pltpu

CONF_TH = 0.9
FRACTION = 0.66
IGNORE_INDEX = 255            # never materialized: ignored pixels contribute 0
LAMBDA_SELFTRAIN = 1.0

_VMEM_FOOTPRINT_BUDGET = 28 * 1024 * 1024   # double-buffered block bytes target
_MAX_TILE_LANES_B = 128 * 1024              # kernel-B pixels per grid step


def _choose_tile_lanes(hw, max_lanes, sub_gran):
    """Largest pixel tile (a multiple of sub_gran*128 lanes) that divides H*W
    and does not exceed max_lanes; whole image if it already fits (full-dim
    blocks are exempt from the (8,128)/(16,128) sublane rule)."""
    if hw % 128 != 0:
        raise ValueError("H*W must be a multiple of 128 for this kernel")
    if hw <= max_lanes:
        return hw
    rows = hw // 128
    r = min(rows, max_lanes // 128)
    r -= r % sub_gran
    while r >= sub_gran:
        if rows % r == 0:
            return r * 128
        r -= sub_gran
    # TODO(synk): no budget-friendly divisor (rows nearly prime); fall back to
    # the whole image rather than adding a padded / masked ragged-tile path.
    return hw


def _vmem_limit_bytes(footprint):
    # Footprint-derived scoped-VMEM budget with headroom; budgeted tiles stay
    # well inside v7x's 64 MiB physical VMEM.
    return int(max(32 * 1024 * 1024, footprint + (8 << 20)))


# ---------------------------------------------------------------------------
# Kernel A: per-pixel softmax statistics, one (C, R, 128) pixel tile at a time.
#   ce  = logsumexp(x) - max(x)   (cross-entropy w.r.t. the argmax label, >= 0)
#   lab = argmax over classes (lowest index on ties)
# Two passes over the class block: fused running max/argmax, then exp-sum.
# Class reduction runs over the leading axis -> pure VPU, outputs land directly
# in the sublane-dense (R, 128) layout.
# ---------------------------------------------------------------------------
def _stats_kernel(x_ref, ce_ref, lab_ref):
    num_classes = x_ref.shape[0]
    m = x_ref[0].astype(jnp.float32)                  # (R, 128)
    lab = jnp.zeros(m.shape, jnp.int32)
    for c in range(1, num_classes):
        xc = x_ref[c].astype(jnp.float32)
        take = xc > m                                 # strict: lowest class wins ties
        m = jnp.where(take, xc, m)
        lab = jnp.where(take, jnp.int32(c), lab)
    s = jnp.zeros(m.shape, jnp.float32)
    for c in range(num_classes):
        s = s + jnp.exp(x_ref[c].astype(jnp.float32) - m)
    ce_ref[...] = jnp.log(s)                          # lse - max  in [0, log C]
    lab_ref[...] = lab


# ---------------------------------------------------------------------------
# Kernel B: masked cross-entropy accumulation.
#   mask = (ce < -log(conf_th)) | (ce <= thr[lab])
# thr comes from the tiny (B, C) SMEM table (static C-step select loop), so no
# per-pixel threshold stream is read from HBM.  Each tile is reduced to a
# (1, 128) lane vector; the output block is a per-(image, outer-chunk)
# accumulator resident in VMEM across the inner pixel-tile axis.
# ---------------------------------------------------------------------------
def _loss_kernel(thr_ref, ce_ref, lab_ref, out_ref, *, ce_conf, num_classes):
    @pl.when(pl.program_id(2) == 0)
    def _():
        out_ref[...] = jnp.zeros_like(out_ref)

    b = pl.program_id(0)
    ce = ce_ref[...]                                  # (R, 128) f32
    lab = lab_ref[...]                                # (R, 128) i32
    thr = jnp.full(ce.shape, jnp.float32(-1.0))       # ce >= 0 => never selected
    for c in range(num_classes):                      # 2C VPU ops / vreg: free
        thr = jnp.where(lab == c, thr_ref[b, c], thr)
    mask = (ce < jnp.float32(ce_conf)) | (ce <= thr)
    contrib = jnp.where(mask, ce, jnp.float32(0.0))
    out_ref[...] += jnp.sum(contrib, axis=0, keepdims=True)   # (1, 128)


# ---------------------------------------------------------------------------
# Glue: per-class CE-space top-fraction threshold table (B, C).
# TODO(synk): the per-class top-k selection needs a data-dependent sort; there
# is no clean Pallas equivalent, so it stays in XLA — one lexicographic
# (lab, ce) sort per image, counts/offsets via searchsorted (no scatter-add).
# ---------------------------------------------------------------------------
def _topk_ce_threshold_table(ce, lab, num_classes, fraction):
    B, HW = ce.shape
    if not (0.0 < fraction < 1.0):
        return jnp.full((B, num_classes), -1.0, jnp.float32)
    slab, sce = jax.lax.sort((lab, ce), dimension=1, num_keys=2)
    class_ids = jnp.arange(num_classes, dtype=lab.dtype)
    off = jax.vmap(lambda s: jnp.searchsorted(s, class_ids, side="left"))(slab)
    end = jax.vmap(lambda s: jnp.searchsorted(s, class_ids, side="right"))(slab)
    cnt = end - off
    k = jnp.floor(cnt.astype(jnp.float32) * fraction).astype(jnp.int32)
    pos = jnp.clip(off + k - 1, 0, HW - 1)
    thr = jnp.take_along_axis(sce, pos, axis=1)       # k-th smallest ce per class
    return jnp.where(k >= 1, thr, jnp.float32(-1.0))  # classes selecting nothing


# ---------------------------------------------------------------------------
# Wrapper: SelfTrainingLoss.forward (teacher=None)
# ---------------------------------------------------------------------------
def self_training_loss(pred, conf_th=CONF_TH, fraction=FRACTION,
                       lambda_selftrain=LAMBDA_SELFTRAIN):
    B, C, H, W = pred.shape
    HW = H * W
    if HW % 128 != 0:
        raise ValueError("H*W must be a multiple of 128 for this kernel")
    rows = HW // 128
    itemsize = jnp.dtype(pred.dtype).itemsize
    sub_gran = max(8, 32 // itemsize)                 # (8,128) f32 / (16,128) bf16

    # --- Kernel A: softmax stats, VMEM-budgeted pixel tiles ------------------
    bpp_a = C * itemsize + 8                          # pred + ce(f32) + lab(i32)
    tile_a = _choose_tile_lanes(HW, _VMEM_FOOTPRINT_BUDGET // (2 * bpp_a), sub_gran)
    ra = tile_a // 128
    n_a = HW // tile_a

    x4 = pred.reshape(B, C, rows, 128)                # native dtype, no upcast

    ce4, lab4 = pl.pallas_call(
        _stats_kernel,
        out_shape=(jax.ShapeDtypeStruct((B, rows, 128), jnp.float32),
                   jax.ShapeDtypeStruct((B, rows, 128), jnp.int32)),
        grid=(B, n_a),
        in_specs=[pl.BlockSpec((None, C, ra, 128), lambda b, t: (b, 0, t, 0))],
        out_specs=(pl.BlockSpec((None, ra, 128), lambda b, t: (b, t, 0)),
                   pl.BlockSpec((None, ra, 128), lambda b, t: (b, t, 0))),
        compiler_params=pltpu.CompilerParams(
            dimension_semantics=("parallel", "parallel"),
            vmem_limit_bytes=_vmem_limit_bytes(2 * bpp_a * tile_a)),
    )(x4)

    # --- Glue: per-class CE thresholds (tiny (B, C) table) -------------------
    ce = ce4.reshape(B, HW)
    lab = lab4.reshape(B, HW)
    thr_table = _topk_ce_threshold_table(ce, lab, C, fraction)

    # --- Kernel B: masked CE sum, large tiles, per-(b, outer) accumulators ---
    tile_b = _choose_tile_lanes(HW, _MAX_TILE_LANES_B, 8)
    rb = tile_b // 128
    n_b = HW // tile_b
    n_outer = 2 if (B == 1 and n_b >= 2 and n_b % 2 == 0) else 1
    n_inner = n_b // n_outer

    ce_conf = -math.log(conf_th) if 0.0 < conf_th < 1.0 else -1.0
    kern = functools.partial(_loss_kernel, ce_conf=ce_conf, num_classes=C)
    partial_sums = pl.pallas_call(
        kern,
        out_shape=jax.ShapeDtypeStruct((B, n_outer, 1, 128), jnp.float32),
        grid=(B, n_outer, n_inner),
        in_specs=[
            pl.BlockSpec(memory_space=pltpu.MemorySpace.SMEM),        # (B, C) thr
            pl.BlockSpec((None, rb, 128),
                         lambda b, o, t: (b, o * n_inner + t, 0)),    # ce
            pl.BlockSpec((None, rb, 128),
                         lambda b, o, t: (b, o * n_inner + t, 0)),    # lab
        ],
        out_specs=pl.BlockSpec((None, None, 1, 128),
                               lambda b, o, t: (b, o, 0, 0)),
        compiler_params=pltpu.CompilerParams(
            dimension_semantics=("parallel", "parallel", "arbitrary"),
            vmem_limit_bytes=_vmem_limit_bytes(2 * 8 * tile_b)),
    )(thr_table, ce4, lab4)

    # F.cross_entropy(..., ignore_index, reduction='none') is 0 at ignored
    # pixels; .mean() divides by the TOTAL pixel count, then * lambda.
    return jnp.sum(partial_sums) / jnp.float32(B * HW) * lambda_selftrain


# ---------------------------------------------------------------------------
# Pure-JAX reference (same math in CE space, independent per-class sorts).
# ---------------------------------------------------------------------------
def reference_loss(pred, conf_th=CONF_TH, fraction=FRACTION,
                   lambda_selftrain=LAMBDA_SELFTRAIN):
    B, C, H, W = pred.shape
    HW = H * W
    x = pred.reshape(B, C, HW).astype(jnp.float32)
    m = jnp.max(x, axis=1)
    ce = jnp.log(jnp.sum(jnp.exp(x - m[:, None, :]), axis=1))   # (B, HW)
    lab = jnp.argmax(x, axis=1)

    if 0.0 < conf_th < 1.0:
        mask = ce < jnp.float32(-math.log(conf_th))   # == (max softmax prob > conf_th)
    else:
        mask = jnp.zeros_like(ce, dtype=bool)

    if 0.0 < fraction < 1.0:
        for c in range(C):
            sel = lab == c
            cnt = jnp.sum(sel, axis=1)                                   # (B,)
            k = jnp.floor(cnt.astype(jnp.float32) * fraction).astype(jnp.int32)
            sce = jnp.sort(jnp.where(sel, ce, jnp.inf), axis=1)          # ascending
            thr = jnp.take_along_axis(
                sce, jnp.clip(k - 1, 0, HW - 1)[:, None], axis=1)        # (B, 1)
            mask = mask | (sel & (ce <= thr) & (k >= 1)[:, None])
    return jnp.sum(jnp.where(mask, ce, 0.0)) / (B * HW) * lambda_selftrain


if __name__ == "__main__":
    key = jax.random.PRNGKey(0)
    B, C, H, W = 2, 4, 16, 16
    pred = jax.random.normal(key, (B, C, H, W), dtype=jnp.float32) * 3.0

    loss = jax.jit(self_training_loss)(pred)
    loss = jax.block_until_ready(loss)

    ref = reference_loss(pred)
    assert jnp.isfinite(loss), loss
    assert jnp.allclose(loss, ref, rtol=1e-4, atol=1e-5), (float(loss), float(ref))

    print("KERNEL_OK")
</pallas_src>

<mosaic_0001>
module attributes {stable_mosaic.version = 11 : i64} {
  func.func @_stats_kernel(%arg0: i32, %arg1: i32, %arg2: memref<1x4x2x128xf32, #tpu.memory_space<vmem>>, %arg3: memref<1x2x128xf32, #tpu.memory_space<vmem>>, %arg4: memref<1x2x128xi32, #tpu.memory_space<vmem>>) attributes {dimension_semantics = [#tpu.dimension_semantics<parallel>, #tpu.dimension_semantics<parallel>], iteration_bounds = array<i64: 2, 1>, scalar_prefetch = 0 : i64, scratch_operands = 0 : i64, tpu.core_type = #tpu.core_type<tc>, window_params = [{transform_indices = @transform_0, window_bounds = array<i64: 1, 4, 2, 128>}, {transform_indices = @transform_1, window_bounds = array<i64: 1, 2, 128>}, {transform_indices = @transform_2, window_bounds = array<i64: 1, 2, 128>}]} {
    %c0 = arith.constant 0 : index
    %c0_0 = arith.constant 0 : index
    %c0_1 = arith.constant 0 : index
    %c0_2 = arith.constant 0 : index
    %0 = vector.load %arg2[%c0, %c0_0, %c0_1, %c0_2] : memref<1x4x2x128xf32, #tpu.memory_space<vmem>>, vector<1x1x2x128xf32>
    %1 = vector.shape_cast %0 : vector<1x1x2x128xf32> to vector<2x128xf32>
    %c0_i32 = arith.constant 0 : i32
    %2 = vector.broadcast %c0_i32 : i32 to vector<2x128xi32>
    %c0_3 = arith.constant 0 : index
    %c1 = arith.constant 1 : index
    %c0_4 = arith.constant 0 : index
    %c0_5 = arith.constant 0 : index
    %3 = vector.load %arg2[%c0_3, %c1, %c0_4, %c0_5] : memref<1x4x2x128xf32, #tpu.memory_space<vmem>>, vector<1x1x2x128xf32>
    %4 = vector.shape_cast %3 : vector<1x1x2x128xf32> to vector<2x128xf32>
    %5 = arith.cmpf ogt, %4, %1 : vector<2x128xf32>
    %6 = arith.select %5, %4, %1 : vector<2x128xi1>, vector<2x128xf32>
    %c1_i32 = arith.constant 1 : i32
    %7 = vector.broadcast %c1_i32 : i32 to vector<2x128xi32>
    %8 = arith.select %5, %7, %2 : vector<2x128xi1>, vector<2x128xi32>
    %c0_6 = arith.constant 0 : index
    %c2 = arith.constant 2 : index
    %c0_7 = arith.constant 0 : index
    %c0_8 = arith.constant 0 : index
    %9 = vector.load %arg2[%c0_6, %c2, %c0_7, %c0_8] : memref<1x4x2x128xf32, #tpu.memory_space<vmem>>, vector<1x1x2x128xf32>
    %10 = vector.shape_cast %9 : vector<1x1x2x128xf32> to vector<2x128xf32>
    %11 = arith.cmpf ogt, %10, %6 : vector<2x128xf32>
    %12 = arith.select %11, %10, %6 : vector<2x128xi1>, vector<2x128xf32>
    %c2_i32 = arith.constant 2 : i32
    %13 = vector.broadcast %c2_i32 : i32 to vector<2x128xi32>
    %14 = arith.select %11, %13, %8 : vector<2x128xi1>, vector<2x128xi32>
    %c0_9 = arith.constant 0 : index
    %c3 = arith.constant 3 : index
    %c0_10 = arith.constant 0 : index
    %c0_11 = arith.constant 0 : index
    %15 = vector.load %arg2[%c0_9, %c3, %c0_10, %c0_11] : memref<1x4x2x128xf32, #tpu.memory_space<vmem>>, vector<1x1x2x128xf32>
    %16 = vector.shape_cast %15 : vector<1x1x2x128xf32> to vector<2x128xf32>
    %17 = arith.cmpf ogt, %16, %12 : vector<2x128xf32>
    %18 = arith.select %17, %16, %12 : vector<2x128xi1>, vector<2x128xf32>
    %c3_i32 = arith.constant 3 : i32
    %19 = vector.broadcast %c3_i32 : i32 to vector<2x128xi32>
    %20 = arith.select %17, %19, %14 : vector<2x128xi1>, vector<2x128xi32>
    %cst = arith.constant 0.000000e+00 : f32
    %21 = vector.broadcast %cst : f32 to vector<2x128xf32>
    %c0_12 = arith.constant 0 : index
    %c0_13 = arith.constant 0 : index
    %c0_14 = arith.constant 0 : index
    %c0_15 = arith.constant 0 : index
    %22 = vector.load %arg2[%c0_12, %c0_13, %c0_14, %c0_15] : memref<1x4x2x128xf32, #tpu.memory_space<vmem>>, vector<1x1x2x128xf32>
    %23 = vector.shape_cast %22 : vector<1x1x2x128xf32> to vector<2x128xf32>
    %24 = arith.subf %23, %18 : vector<2x128xf32>
    %25 = math.exp %24 : vector<2x128xf32>
    %26 = arith.addf %21, %25 : vector<2x128xf32>
    %c0_16 = arith.constant 0 : index
    %c1_17 = arith.constant 1 : index
    %c0_18 = arith.constant 0 : index
    %c0_19 = arith.constant 0 : index
    %27 = vector.load %arg2[%c0_16, %c1_17, %c0_18, %c0_19] : memref<1x4x2x128xf32, #tpu.memory_space<vmem>>, vector<1x1x2x128xf32>
    %28 = vector.shape_cast %27 : vector<1x1x2x128xf32> to vector<2x128xf32>
    %29 = arith.subf %28, %18 : vector<2x128xf32>
    %30 = math.exp %29 : vector<2x128xf32>
    %31 = arith.addf %26, %30 : vector<2x128xf32>
    %c0_20 = arith.constant 0 : index
    %c2_21 = arith.constant 2 : index
    %c0_22 = arith.constant 0 : index
    %c0_23 = arith.constant 0 : index
    %32 = vector.load %arg2[%c0_20, %c2_21, %c0_22, %c0_23] : memref<1x4x2x128xf32, #tpu.memory_space<vmem>>, vector<1x1x2x128xf32>
    %33 = vector.shape_cast %32 : vector<1x1x2x128xf32> to vector<2x128xf32>
    %34 = arith.subf %33, %18 : vector<2x128xf32>
    %35 = math.exp %34 : vector<2x128xf32>
    %36 = arith.addf %31, %35 : vector<2x128xf32>
    %c0_24 = arith.constant 0 : index
    %c3_25 = arith.constant 3 : index
    %c0_26 = arith.constant 0 : index
    %c0_27 = arith.constant 0 : index
    %37 = vector.load %arg2[%c0_24, %c3_25, %c0_26, %c0_27] : memref<1x4x2x128xf32, #tpu.memory_space<vmem>>, vector<1x1x2x128xf32>
    %38 = vector.shape_cast %37 : vector<1x1x2x128xf32> to vector<2x128xf32>
    %39 = arith.subf %38, %18 : vector<2x128xf32>
    %40 = math.exp %39 : vector<2x128xf32>
    %41 = arith.addf %36, %40 : vector<2x128xf32>
    %42 = math.log %41 : vector<2x128xf32>
    %c0_28 = arith.constant 0 : index
    %c0_29 = arith.constant 0 : index
    %c0_30 = arith.constant 0 : index
    %43 = vector.load %arg3[%c0_28, %c0_29, %c0_30] : memref<1x2x128xf32, #tpu.memory_space<vmem>>, vector<1x2x128xf32>
    %44 = vector.shape_cast %43 : vector<1x2x128xf32> to vector<2x128xf32>
    %45 = vector.shape_cast %42 : vector<2x128xf32> to vector<1x2x128xf32>
    tpu.vector_store %arg3[%c0_28, %c0_29, %c0_30], %45 {strides = array<i32>} : memref<1x2x128xf32, #tpu.memory_space<vmem>>, vector<1x2x128xf32>,
    %c0_31 = arith.constant 0 : index
    %c0_32 = arith.constant 0 : index
    %c0_33 = arith.constant 0 : index
    %46 = vector.load %arg4[%c0_31, %c0_32, %c0_33] : memref<1x2x128xi32, #tpu.memory_space<vmem>>, vector<1x2x128xi32>
    %47 = vector.shape_cast %46 : vector<1x2x128xi32> to vector<2x128xi32>
    %48 = vector.shape_cast %20 : vector<2x128xi32> to vector<1x2x128xi32>
    tpu.vector_store %arg4[%c0_31, %c0_32, %c0_33], %48 {strides = array<i32>} : memref<1x2x128xi32, #tpu.memory_space<vmem>>, vector<1x2x128xi32>,
    return
  }
  func.func @transform_0(%arg0: i32, %arg1: i32) -> (i32, i32, i32, i32) {
    %c0_i32 = arith.constant 0 : i32
    %c0_i32_0 = arith.constant 0 : i32
    %c0_i32_1 = arith.constant 0 : i32
    return %arg0, %c0_i32, %arg1, %c0_i32_0 : i32, i32, i32, i32
  }
  func.func @transform_1(%arg0: i32, %arg1: i32) -> (i32, i32, i32) {
    %c0_i32 = arith.constant 0 : i32
    %c0_i32_0 = arith.constant 0 : i32
    return %arg0, %arg1, %c0_i32 : i32, i32, i32
  }
  func.func @transform_2(%arg0: i32, %arg1: i32) -> (i32, i32, i32) {
    %c0_i32 = arith.constant 0 : i32
    %c0_i32_0 = arith.constant 0 : i32
    return %arg0, %arg1, %c0_i32 : i32, i32, i32
  }
}

module attributes {stable_mosaic.version = 11 : i64} {
  func.func @_loss_kernel(%arg0: i32, %arg1: i32, %arg2: i32, %arg3: memref<2x4xf32, #tpu.memory_space<smem>>, %arg4: memref<1x2x128xf32, #tpu.memory_space<vmem>>, %arg5: memref<1x2x128xi32, #tpu.memory_space<vmem>>, %arg6: memref<1x1x1x128xf32, #tpu.memory_space<vmem>>) attributes {dimension_semantics = [#tpu.dimension_semantics<parallel>, #tpu.dimension_semantics<parallel>, #tpu.dimension_semantics<arbitrary>], iteration_bounds = array<i64: 2, 1, 1>, scalar_prefetch = 0 : i64, scratch_operands = 0 : i64, tpu.core_type = #tpu.core_type<tc>, window_params = [{transform_indices = @transform_0, window_bounds = array<i64: 2, 4>}, {transform_indices = @transform_1, window_bounds = array<i64: 1, 2, 128>}, {transform_indices = @transform_2, window_bounds = array<i64: 1, 2, 128>}, {transform_indices = @transform_3, window_bounds = array<i64: 1, 1, 1, 128>}]} {
    %c0_i32 = arith.constant 0 : i32
    %0 = arith.cmpi eq, %arg2, %c0_i32 : i32
    %1 = arith.extui %0 : i1 to i32
    %c0_i32_0 = arith.constant 0 : i32
    %2 = arith.cmpi ne, %1, %c0_i32_0 : i32
    scf.if %2 {
      %cst_19 = arith.constant 0.000000e+00 : f32
      %46 = vector.broadcast %cst_19 : f32 to vector<1x128xf32>
      %c0_20 = arith.constant 0 : index
      %c0_21 = arith.constant 0 : index
      %c0_22 = arith.constant 0 : index
      %c0_23 = arith.constant 0 : index
      %47 = vector.load %arg6[%c0_20, %c0_21, %c0_22, %c0_23] : memref<1x1x1x128xf32, #tpu.memory_space<vmem>>, vector<1x1x1x128xf32>
      %48 = vector.shape_cast %47 : vector<1x1x1x128xf32> to vector<1x128xf32>
      %49 = vector.shape_cast %46 : vector<1x128xf32> to vector<1x1x1x128xf32>
      tpu.vector_store %arg6[%c0_20, %c0_21, %c0_22, %c0_23], %49 {strides = array<i32>} : memref<1x1x1x128xf32, #tpu.memory_space<vmem>>, vector<1x1x1x128xf32>,
    } else {
    }
    %c0 = arith.constant 0 : index
    %c0_1 = arith.constant 0 : index
    %c0_2 = arith.constant 0 : index
    %3 = vector.load %arg4[%c0, %c0_1, %c0_2] : memref<1x2x128xf32, #tpu.memory_space<vmem>>, vector<1x2x128xf32>
    %4 = vector.shape_cast %3 : vector<1x2x128xf32> to vector<2x128xf32>
    %c0_3 = arith.constant 0 : index
    %c0_4 = arith.constant 0 : index
    %c0_5 = arith.constant 0 : index
    %5 = vector.load %arg5[%c0_3, %c0_4, %c0_5] : memref<1x2x128xi32, #tpu.memory_space<vmem>>, vector<1x2x128xi32>
    %6 = vector.shape_cast %5 : vector<1x2x128xi32> to vector<2x128xi32>
    %cst = arith.constant -1.000000e+00 : f32
    %7 = vector.broadcast %cst : f32 to vector<2x128xf32>
    %c0_i32_6 = arith.constant 0 : i32
    %8 = vector.broadcast %c0_i32_6 : i32 to vector<2x128xi32>
    %9 = arith.cmpi eq, %6, %8 : vector<2x128xi32>
    %10 = arith.index_cast %arg0 : i32 to index
    %c0_7 = arith.constant 0 : index
    %11 = memref.load %arg3[%10, %c0_7] : memref<2x4xf32, #tpu.memory_space<smem>>
    %12 = vector.broadcast %11 : f32 to vector<2x128xf32>
    %13 = arith.select %9, %12, %7 : vector<2x128xi1>, vector<2x128xf32>
    %c1_i32 = arith.constant 1 : i32
    %14 = vector.broadcast %c1_i32 : i32 to vector<2x128xi32>
    %15 = arith.cmpi eq, %6, %14 : vector<2x128xi32>
    %16 = arith.index_cast %arg0 : i32 to index
    %c1 = arith.constant 1 : index
    %17 = memref.load %arg3[%16, %c1] : memref<2x4xf32, #tpu.memory_space<smem>>
    %18 = vector.broadcast %17 : f32 to vector<2x128xf32>
    %19 = arith.select %15, %18, %13 : vector<2x128xi1>, vector<2x128xf32>
    %c2_i32 = arith.constant 2 : i32
    %20 = vector.broadcast %c2_i32 : i32 to vector<2x128xi32>
    %21 = arith.cmpi eq, %6, %20 : vector<2x128xi32>
    %22 = arith.index_cast %arg0 : i32 to index
    %c2 = arith.constant 2 : index
    %23 = memref.load %arg3[%22, %c2] : memref<2x4xf32, #tpu.memory_space<smem>>
    %24 = vector.broadcast %23 : f32 to vector<2x128xf32>
    %25 = arith.select %21, %24, %19 : vector<2x128xi1>, vector<2x128xf32>
    %c3_i32 = arith.constant 3 : i32
    %26 = vector.broadcast %c3_i32 : i32 to vector<2x128xi32>
    %27 = arith.cmpi eq, %6, %26 : vector<2x128xi32>
    %28 = arith.index_cast %arg0 : i32 to index
    %c3 = arith.constant 3 : index
    %29 = memref.load %arg3[%28, %c3] : memref<2x4xf32, #tpu.memory_space<smem>>
    %30 = vector.broadcast %29 : f32 to vector<2x128xf32>
    %31 = arith.select %27, %30, %25 : vector<2x128xi1>, vector<2x128xf32>
    %cst_8 = arith.constant 0.105360515 : f32
    %32 = vector.broadcast %cst_8 : f32 to vector<2x128xf32>
    %33 = arith.cmpf olt, %4, %32 : vector<2x128xf32>
    %34 = arith.cmpf ole, %4, %31 : vector<2x128xf32>
    %35 = arith.ori %33, %34 : vector<2x128xi1>
    %cst_9 = arith.constant 0.000000e+00 : f32
    %36 = vector.broadcast %cst_9 : f32 to vector<2x128xf32>
    %37 = arith.select %35, %4, %36 : vector<2x128xi1>, vector<2x128xf32>
    %c0_10 = arith.constant 0 : index
    %c0_11 = arith.constant 0 : index
    %c0_12 = arith.constant 0 : index
    %c0_13 = arith.constant 0 : index
    %38 = vector.load %arg6[%c0_10, %c0_11, %c0_12, %c0_13] : memref<1x1x1x128xf32, #tpu.memory_space<vmem>>, vector<1x1x1x128xf32>
    %39 = vector.shape_cast %38 : vector<1x1x1x128xf32> to vector<1x128xf32>
    %cst_14 = arith.constant dense<0.000000e+00> : vector<128xf32>
    %40 = vector.multi_reduction <add>, %37, %cst_14 [0] : vector<2x128xf32> to vector<128xf32>
    %41 = vector.shape_cast %40 : vector<128xf32> to vector<1x128xf32>
    %42 = arith.addf %39, %41 : vector<1x128xf32>
    %c0_15 = arith.constant 0 : index
    %c0_16 = arith.constant 0 : index
    %c0_17 = arith.constant 0 : index
    %c0_18 = arith.constant 0 : index
    %43 = vector.load %arg6[%c0_15, %c0_16, %c0_17, %c0_18] : memref<1x1x1x128xf32, #tpu.memory_space<vmem>>, vector<1x1x1x128xf32>
    %44 = vector.shape_cast %43 : vector<1x1x1x128xf32> to vector<1x128xf32>
    %45 = vector.shape_cast %42 : vector<1x128xf32> to vector<1x1x1x128xf32>
    tpu.vector_store %arg6[%c0_15, %c0_16, %c0_17, %c0_18], %45 {strides = array<i32>} : memref<1x1x1x128xf32, #tpu.memory_space<vmem>>, vector<1x1x1x128xf32>,
    return
  }
  func.func @transform_0(%arg0: i32, %arg1: i32, %arg2: i32) -> (i32, i32) {
    %c0_i32 = arith.constant 0 : i32
    %c0_i32_0 = arith.constant 0 : i32
    %c0_i32_1 = arith.constant 0 : i32
    return %c0_i32, %c0_i32_0 : i32, i32
  }
  func.func @transform_1(%arg0: i32, %arg1: i32, %arg2: i32) -> (i32, i32, i32) {
    %c1_i32 = arith.constant 1 : i32
    %0 = arith.muli %arg1, %c1_i32 : i32
    %1 = arith.addi %0, %arg2 : i32
    %c0_i32 = arith.constant 0 : i32
    %c0_i32_0 = arith.constant 0 : i32
    return %arg0, %1, %c0_i32 : i32, i32, i32
  }
  func.func @transform_2(%arg0: i32, %arg1: i32, %arg2: i32) -> (i32, i32, i32) {
    %c1_i32 = arith.constant 1 : i32
    %0 = arith.muli %arg1, %c1_i32 : i32
    %1 = arith.addi %0, %arg2 : i32
    %c0_i32 = arith.constant 0 : i32
    %c0_i32_0 = arith.constant 0 : i32
    return %arg0, %1, %c0_i32 : i32, i32, i32
  }
  func.func @transform_3(%arg0: i32, %arg1: i32, %arg2: i32) -> (i32, i32, i32, i32) {
    %c0_i32 = arith.constant 0 : i32
    %c0_i32_0 = arith.constant 0 : i32
    %c0_i32_1 = arith.constant 0 : i32
    return %arg0, %arg1, %c0_i32, %c0_i32_0 : i32, i32, i32, i32
  }
}

</mosaic_0001>

<llo_original>
// kernel: custom-call.6
$region0: #{custom-call.6}
  %s0 = inlined_call_operand.vmem [shape: u32[2,4], index: 0, kind: output, shape index: {}]

// kernel: squeeze.14
$region0: #{squeeze.14}
  %s0 = inlined_call_operand.vmem [shape: s32[8], index: 0, kind: input, shape index: {}]
  %s1 = inlined_call_operand.vmem [shape: s32[2,4], index: 1, kind: output, shape index: {}]
  $region1: #{squeeze.14} parent=0
    #allocation0 [shape = 'u8[4096]{0}', space=vmem, size = 0x1000, scoped, tag = 'scoped mem for output reshape']
    #allocation1 [shape = 'u8[4096]{0}', space=vmem, size = 0x1000, scoped, tag = 'scoped mem for input reshape']
    %s3 = sshllo.u32 0, 1
    %v4 = vld [vmem:[%s0] sm:%s3]
    %5 = vst [vmem:[#allocation1] sm:%s3] %v4
    %v6 = vld [vmem:[#allocation1] sm:$0x1]
    %vm7 = vcmask 31744
    %8 = vst.msk [vmem:[#allocation0] sm:$0x1] %vm7, %v6
    %v9 = vld [vmem:[#allocation1] sm:$0x1]
    %10 = vrot.lane.b32.xlu0 %v9, 124
    %v11 = vpop.permute.xlu0 %10
    %vm12 = vcmask 31744
    %s13 = scalar_lea.vmem [#allocation0], 1
    %14 = vst.msk [vmem:[%s13] sm:$0x1] %vm12, %v11
    %s16 = sshllo.u32 0, 2
    %v18 = vld [vmem:[#allocation0] sm:%s16]
    %s19 = sshllo.u32 0, 2
    %20 = vst [vmem:[%s1] sm:%s19] %v18

// kernel: self_training_loss.2
$region0: #{self_training_loss.2}
  #allocation0 [shape = 'u32[]', space=smem, size = 0x4, offset = 0x4, fixed_abs, tag = 'smem constant byte address 0x4 - core index']
  #allocation1 [shape = 'u32[144,128]{1,0:T(1,128)}', space=vmem, size = 0x12000, scoped, tag = 'internal scratch']
  %s0 = inlined_call_operand.vmem [shape: f32[2,4,2,128], index: 0, kind: input, shape index: {}]
  %s1 = inlined_call_operand.vmem [shape: f32[2,2,128], index: 1, kind: output, shape index: {0}]
  %s2 = inlined_call_operand.vmem [shape: s32[2,2,128], index: 2, kind: output, shape index: {1}]
  %3 = xla_tuple %s1, %s2
  %s4 = sld [smem:[#allocation0]]
  $region45: #{self_training_loss.2} parent=0
    _
  %s6 = ssub.s32 1, %s4
  %s7 = scalar_select 0, %s6, %s4
  loop: start=0, step=1, limit=4
  $region2: #{self_training_loss.2} parent=0 // loop_pre_header
    _
  $region3: #{self_training_loss.2} parent=0 // loop_header
    %s9 = sphi 0, %s13
    %p10 = scmp.ge.s32.totalorder %s9, 4
    %s16 = sphi 0, %s28
    %s17 = sphi 0, %s24
    %s18 = sphi 0, %s16
    %s19 = sphi 0, %s17
    %s20 = sphi 0, %s18
    %s21 = sphi 0, %s19
    %s33 = sphi 0, %s35
    %s36 = sphi 0, %s33
    %s37 = sphi 0, %s36
    %s53 = sphi 0, %s37
    %s61 = sphi 0, %s63
    %s64 = sphi 0, %s61
    %s65 = sphi 0, %s64
    %s81 = sphi 0, %s65
    %s89 = sphi 0, %s91
    %s92 = sphi 0, %s89
    %s93 = sphi 0, %s92
    %s109 = sphi 0, %s93
  $region4: #{self_training_loss.2} parent=0 // loop_header_branch
    %12 = sbr.rel (%p10) target = $region8
  $region5: #{self_training_loss.2} parent=0 // loop_body
    %s14 = ssub.s32 %s9, 1
    %s15 = ssub.s32 %s9, 2
    %s22 = sadd.s32 1, %s17
    %p23 = scmp.ge.s32.totalorder %s22, 1
    %s24 = scalar_select %p23, 0, %s22
    %s25 = sadd.s32 1, %s16
    %s26 = scalar_select %p23, %s25, %s16
    %p27 = scmp.ge.s32.totalorder %s26, 2
    %s28 = scalar_select %p27, 0, %s26
    %s29 = ssub.s32 %s16, %s28
    %s30 = ssub.s32 %s17, %s24
    %s31 = sor.u32 %s29, %s30
    %p32 = scmp.eq.s32.totalorder %s31, 0
    %s34 = sadd.s32 %s33, 1
    %s35 = scalar_select %p32, %s33, %s34
    %p38 = pneg %p32
    %p39 = scmp.eq.s32.totalorder %s9, 1
    %p40 = por %p38, %p39
    %p41 = scmp.ne.s32.totalorder %s33, %s36
    %p42 = scmp.eq.s32.totalorder %s9, 0
    %p43 = por %p41, %p42
    %p44 = scmp.ne.s32.totalorder %s33, %s36
    %p45 = scmp.eq.s32.totalorder %s14, 1
    %p46 = por %p44, %p45
    %p47 = scmp.ne.s32.totalorder %s36, %s37
    %p48 = scmp.eq.s32.totalorder %s14, 0
    %p49 = por %p47, %p48
    %p50 = scmp.ne.s32.totalorder %s36, %s37
    %p51 = scmp.eq.s32.totalorder %s15, 1
    %p52 = por %p50, %p51
    %p54 = scmp.ne.s32.totalorder %s37, %s53
    %p55 = scmp.eq.s32.totalorder %s15, 0
    %p56 = por %p54, %p55
    %s57 = ssub.s32 %s16, %s28
    %s58 = ssub.s32 %s17, %s24
    %s59 = sor.u32 %s57, %s58
    %p60 = scmp.eq.s32.totalorder %s59, 0
    %s62 = sadd.s32 %s61, 1
    %s63 = scalar_select %p60, %s61, %s62
    %p66 = pneg %p60
    %p67 = scmp.eq.s32.totalorder %s9, 1
    %p68 = por %p66, %p67
    %p69 = scmp.ne.s32.totalorder %s61, %s64
    %p70 = scmp.eq.s32.totalorder %s9, 0
    %p71 = por %p69, %p70
    %p72 = scmp.ne.s32.totalorder %s61, %s64
    %p73 = scmp.eq.s32.totalorder %s14, 1
    %p74 = por %p72, %p73
    %p75 = scmp.ne.s32.totalorder %s64, %s65
    %p76 = scmp.eq.s32.totalorder %s14, 0
    %p77 = por %p75, %p76
    %p78 = scmp.ne.s32.totalorder %s64, %s65
    %p79 = scmp.eq.s32.totalorder %s15, 1
    %p80 = por %p78, %p79
    %p82 = scmp.ne.s32.totalorder %s65, %s81
    %p83 = scmp.eq.s32.totalorder %s15, 0
    %p84 = por %p82, %p83
    %s85 = ssub.s32 %s16, %s28
    %s86 = ssub.s32 %s17, %s24
    %s87 = sor.u32 %s85, %s86
    %p88 = scmp.eq.s32.totalorder %s87, 0
    %s90 = sadd.s32 %s89, 1
    %s91 = scalar_select %p88, %s89, %s90
    %p94 = pneg %p88
    %p95 = scmp.eq.s32.totalorder %s9, 1
    %p96 = por %p94, %p95
    %p97 = scmp.ne.s32.totalorder %s89, %s92
    %p98 = scmp.eq.s32.totalorder %s9, 0
    %p99 = por %p97, %p98
    %p100 = scmp.ne.s32.totalorder %s89, %s92
    %p101 = scmp.eq.s32.totalorder %s14, 1
    %p102 = por %p100, %p101
    %p103 = scmp.ne.s32.totalorder %s92, %s93
    %p104 = scmp.eq.s32.totalorder %s14, 0
    %p105 = por %p103, %p104
    %p106 = scmp.ne.s32.totalorder %s92, %s93
    %p107 = scmp.eq.s32.totalorder %s15, 1
    %p108 = por %p106, %p107
    %p110 = scmp.ne.s32.totalorder %s93, %s109
    %p111 = scmp.eq.s32.totalorder %s15, 0
    %p112 = por %p110, %p111
    %p113 = scmp.le.s32.totalorder 1, %s9
    %p114 = scmp.lt.s32.totalorder %s9, 3
    %p115 = pnand %p113, %p114
    %p116 = pneg %p115
    // Predicated region
    $region9: #{self_training_loss.2} parent=5 // pred_check
      _
    $region10: #{self_training_loss.2} parent=5 // pred_check_branch
      %118 = sbr.rel (%p115) target = $region12
    $region11: #{self_training_loss.2} parent=5 // pred_region
      %s119 = ssub.s32 %s9, 1
    $region12: #{self_training_loss.2} parent=5 // pred_fallthru
      _
    %p120 = scmp.lt.s32.totalorder %s9, 2
    // Predicated region
    $region13: #{self_training_loss.2} parent=5 // pred_check
      %p121 = pneg %p120
    $region14: #{self_training_loss.2} parent=5 // pred_check_branch
      %123 = sbr.rel (%p121) target = $region16
    $region15: #{self_training_loss.2} parent=5 // pred_region
      // Predicated region
      $region17: #{self_training_loss.2} parent=15 // pred_check
        %p124 = pneg %p43
      $region18: #{self_training_loss.2} parent=15 // pred_check_branch
        %126 = sbr.rel (%p124) target = $region20
      $region19: #{self_training_loss.2} parent=15 // pred_region
        %p127 = scmp.lt.s32.totalorder %s16, 1
        %s128 = scalar_select %p127, %s16, 1
        %p129 = scmp.lt.s32.totalorder %s17, 0
        %s130 = scalar_select %p129, %s17, 0
        %s131 = smul.addr %s128, 4
        %s132 = sadd.s32 %s130, %s131
        %s133 = smul.addr %s132, 2
        %s134 = scalar_lea.vmem %s0, %s133
      $region20: #{self_training_loss.2} parent=15 // pred_fallthru
        _
    $region16: #{self_training_loss.2} parent=5 // pred_fallthru
      _
    %p135 = scmp.le.s32.totalorder 1, %s9
    %p136 = scmp.lt.s32.totalorder %s9, 3
    %p137 = pnand %p135, %p136
    %p138 = pneg %p137
    // Predicated region
    $region21: #{self_training_loss.2} parent=5 // pred_check
      _
    $region22: #{self_training_loss.2} parent=5 // pred_check_branch
      %140 = sbr.rel (%p137) target = $region24
    $region23: #{self_training_loss.2} parent=5 // pred_region
      %s141 = ssub.s32 %s9, 1
      %p142 = scmp.lt.s32.totalorder %s18, 1
      %s143 = scalar_select %p142, %s18, 1
      %p144 = scmp.lt.s32.totalorder %s19, 0
      %s145 = scalar_select %p144, %s19, 0
      %s146 = smul.addr %s143, 4
      %s147 = sadd.s32 %s145, %s146
      %s148 = smul.addr %s147, 2
      %s149 = scalar_lea.vmem %s0, %s148
      %p150 = pneg %p49
      %p151 = pneg %p46
      %p152 = pneg %p77
      %p153 = pneg %p74
      %p154 = scmp.lt.s32.totalorder %s18, 1
      %s155 = scalar_select %p154, %s18, 1
      %p156 = scmp.lt.s32.totalorder %s19, 0
      %s157 = scalar_select %p156, %s19, 0
      %s158 = sadd.s32 %s157, %s155
      %s159 = smul.addr %s158, 2
      %s160 = scalar_lea.vmem %s1, %s159
      %p161 = pneg %p105
      %p162 = pneg %p102
      %p163 = scmp.lt.s32.totalorder %s18, 1
      %s164 = scalar_select %p163, %s18, 1
      %p165 = scmp.lt.s32.totalorder %s19, 0
      %s166 = scalar_select %p165, %s19, 0
      %s167 = sadd.s32 %s166, %s164
      %s168 = smul.addr %s167, 2
      %s169 = scalar_lea.vmem %s2, %s168
      %p170 = scmp.lt.s32.totalorder %s18, 1
      %s171 = scalar_select %p170, %s18, 1
      %p172 = scmp.lt.s32.totalorder %s19, 0
      %s173 = scalar_select %p172, %s19, 0
      %s174 = smul.addr %s171, 4
      %s175 = sadd.s32 %s173, %s174
      %s176 = smul.addr %s175, 2
      %s177 = scalar_lea.vmem %s0, %s176
      %p178 = scmp.lt.s32.totalorder %s18, 1
      %s179 = scalar_select %p178, %s18, 1
      %p180 = scmp.lt.s32.totalorder %s19, 0
      %s181 = scalar_select %p180, %s19, 0
      %s182 = sadd.s32 %s181, %s179
      %s183 = smul.addr %s182, 2
      %s184 = scalar_lea.vmem %s1, %s183
      %p185 = scmp.lt.s32.totalorder %s18, 1
      %s186 = scalar_select %p185, %s18, 1
      %p187 = scmp.lt.s32.totalorder %s19, 0
      %s188 = scalar_select %p187, %s19, 0
      %s189 = sadd.s32 %s188, %s186
      %s190 = smul.addr %s189, 2
      %s191 = scalar_lea.vmem %s2, %s190
      %v192 = vld [vmem:[%s177] sm:$0x3]
      %s193 = scalar_lea.vmem %s177, 2
      %v194 = vld [vmem:[%s193] sm:$0x3]
      %vm195 = vcmp.gt.f32.partialorder %v194, %v192
      %v196 = vsel %vm195, %v194, %v192
      %v197 = vsel %vm195, 1, 0
      %s198 = scalar_lea.vmem %s177, 4
      %v199 = vld [vmem:[%s198] sm:$0x3]
      %vm200 = vcmp.gt.f32.partialorder %v199, %v196
      %v201 = vsel %vm200, %v199, %v196
      %v202 = vsel %vm200, 2, %v197
      %s203 = scalar_lea.vmem %s177, 6
      %v204 = vld [vmem:[%s203] sm:$0x3]
      %vm205 = vcmp.gt.f32.partialorder %v204, %v201
      %v206 = vsel %vm205, %v204, %v201
      %v207 = vsel %vm205, 3, %v202
      %v208 = vsub.f32 %v192, %v206
      %v209 = vmul.f32 %v208, 1.442695
      %v210 = vpow.pop %v209
      %v211 = vadd.f32 %v210, 0.0
      %v212 = vsub.f32 %v194, %v206
      %v213 = vmul.f32 %v212, 1.442695
      %v214 = vpow.pop %v213
      %v215 = vadd.f32 %v211, %v214
      %v216 = vsub.f32 %v199, %v206
      %v217 = vmul.f32 %v216, 1.442695
      %v218 = vpow.pop %v217
      %v219 = vadd.f32 %v215, %v218
      %v220 = vsub.f32 %v204, %v206
      %v221 = vmul.f32 %v220, 1.442695
      %v222 = vpow.pop %v221
      %v223 = vadd.f32 %v219, %v222
      %v224 = vlog2.pop %v223
      %v225 = vmul.f32 %v224, 0.6931472
      %226 = vst [vmem:[%s184] sm:$0x3] %v225
      %227 = vst [vmem:[%s191] sm:$0x3] %v207
      %p228 = scmp.lt.s32.totalorder %s18, 1
      %s229 = scalar_select %p228, %s18, 1
      %p230 = scmp.lt.s32.totalorder %s19, 0
      %s231 = scalar_select %p230, %s19, 0
      %s232 = sadd.s32 %s231, %s229
      %s233 = smul.addr %s232, 2
      %s234 = scalar_lea.vmem %s1, %s233
      %p235 = scmp.lt.s32.totalorder %s18, 1
      %s236 = scalar_select %p235, %s18, 1
      %p237 = scmp.lt.s32.totalorder %s19, 0
      %s238 = scalar_select %p237, %s19, 0
      %s239 = sadd.s32 %s238, %s236
      %s240 = smul.addr %s239, 2
      %s241 = scalar_lea.vmem %s2, %s240
      // Predicated region
      $region25: #{self_training_loss.2} parent=23 // pred_check
        %p242 = pneg %p74
      $region26: #{self_training_loss.2} parent=23 // pred_check_branch
        %244 = sbr.rel (%p242) target = $region28
      $region27: #{self_training_loss.2} parent=23 // pred_region
        _
      $region28: #{self_training_loss.2} parent=23 // pred_fallthru
        _
      // Predicated region
      $region29: #{self_training_loss.2} parent=23 // pred_check
        %p245 = pneg %p102
      $region30: #{self_training_loss.2} parent=23 // pred_check_branch
        %247 = sbr.rel (%p245) target = $region32
      $region31: #{self_training_loss.2} parent=23 // pred_region
        _
      $region32: #{self_training_loss.2} parent=23 // pred_fallthru
        _
    $region24: #{self_training_loss.2} parent=5 // pred_fallthru
      _
    %p248 = scmp.le.s32.totalorder 2, %s9
    // Predicated region
    $region33: #{self_training_loss.2} parent=5 // pred_check
      %p249 = pneg %p248
    $region34: #{self_training_loss.2} parent=5 // pred_check_branch
      %251 = sbr.rel (%p249) target = $region36
    $region35: #{self_training_loss.2} parent=5 // pred_region
      %s252 = ssub.s32 %s9, 2
      // Predicated region
      $region37: #{self_training_loss.2} parent=35 // pred_check
        %p253 = pneg %p80
      $region38: #{self_training_loss.2} parent=35 // pred_check_branch
        %255 = sbr.rel (%p253) target = $region40
      $region39: #{self_training_loss.2} parent=35 // pred_region
        %p256 = scmp.lt.s32.totalorder %s20, 1
        %s257 = scalar_select %p256, %s20, 1
        %p258 = scmp.lt.s32.totalorder %s21, 0
        %s259 = scalar_select %p258, %s21, 0
        %s260 = sadd.s32 %s259, %s257
        %s261 = smul.addr %s260, 2
        %s262 = scalar_lea.vmem %s1, %s261
      $region40: #{self_training_loss.2} parent=35 // pred_fallthru
        _
      // Predicated region
      $region41: #{self_training_loss.2} parent=35 // pred_check
        %p263 = pneg %p108
      $region42: #{self_training_loss.2} parent=35 // pred_check_branch
        %265 = sbr.rel (%p263) target = $region44
      $region43: #{self_training_loss.2} parent=35 // pred_region
        %p266 = scmp.lt.s32.totalorder %s20, 1
        %s267 = scalar_select %p266, %s20, 1
        %p268 = scmp.lt.s32.totalorder %s21, 0
        %s269 = scalar_select %p268, %s21, 0
        %s270 = sadd.s32 %s269, %s267
        %s271 = smul.addr %s270, 2
        %s272 = scalar_lea.vmem %s2, %s271
      $region44: #{self_training_loss.2} parent=35 // pred_fallthru
        _
    $region36: #{self_training_loss.2} parent=5 // pred_fallthru
      _
  $region6: #{self_training_loss.2} parent=0 // loop_footer
    %s13 = sadd.s32 1, %s9
  $region7: #{self_training_loss.2} parent=0 // loop_footer_branch
    %8 = sbr.rel target = $region3
  $region8: #{self_training_loss.2} parent=0 // loop_exit
    _

// kernel: self_training_loss.3
$region0: #{self_training_loss.3}
  #allocation0 [shape = 'u32[]', space=smem, size = 0x4, offset = 0x4, fixed_abs, tag = 'smem constant byte address 0x4 - core index']
  #allocation1 [shape = 'u32[144,128]{1,0:T(1,128)}', space=vmem, size = 0x12000, scoped, tag = 'internal scratch']
  %s0 = inlined_call_operand.vmem [shape: f32[2,4], index: 0, kind: input, shape index: {}]
  %s1 = inlined_call_operand.vmem [shape: f32[2,2,128], index: 1, kind: input, shape index: {}]
  %s2 = inlined_call_operand.vmem [shape: s32[2,2,128], index: 2, kind: input, shape index: {}]
  %s3 = inlined_call_operand.vmem [shape: f32[2,1,1,128], index: 3, kind: output, shape index: {}]
  %s4 = sld [smem:[#allocation0]]
  $region53: #{self_training_loss.3} parent=0
    _
  %s6 = ssub.s32 1, %s4
  %s7 = scalar_select 0, %s6, %s4
  $region1: #{self_training_loss.3} parent=0
    #allocation2 [shape = 'u8[1024]{0}', space=smem, size = 0x400, scoped, tag = 'input window, operand 0, single buffered']
    #allocation3 [shape = 's32[2]{0}', space=sflag, size = 0x8, scoped, tag = 'scoped memory for self_training_loss.3']
    %8 = vsyncpa [#allocation3], 0
    loop: start=0, step=1, limit=4
    $region2: #{self_training_loss.3} parent=1 // loop_pre_header
      _
    $region3: #{self_training_loss.3} parent=1 // loop_header
      %s10 = sphi 0, %s14
      %p11 = scmp.ge.s32.totalorder %s10, 4
      %s17 = sphi 0, %s36
      %s18 = sphi 0, %s32
      %s19 = sphi 0, %s28
      %s20 = sphi 0, %s17
      %s21 = sphi 0, %s18
      %s22 = sphi 0, %s19
      %s23 = sphi 0, %s20
      %s24 = sphi 0, %s21
      %s25 = sphi 0, %s22
      %s37 = sphi 0, %s37
      %s39 = sphi 0, %s37
      %s40 = sphi 0, %s39
      %s54 = sphi 0, %s40
      %s64 = sphi 0, %s66
      %s67 = sphi 0, %s64
      %s68 = sphi 0, %s67
      %s84 = sphi 0, %s68
      %s94 = sphi 0, %s96
      %s97 = sphi 0, %s94
      %s98 = sphi 0, %s97
      %s114 = sphi 0, %s98
      %s122 = sphi 0, %s124
      %s125 = sphi 0, %s122
      %s126 = sphi 0, %s125
      %s142 = sphi 0, %s126
    $region4: #{self_training_loss.3} parent=1 // loop_header_branch
      %13 = sbr.rel (%p11) target = $region8
    $region5: #{self_training_loss.3} parent=1 // loop_body
      %s15 = ssub.s32 %s10, 1
      %s16 = ssub.s32 %s10, 2
      %s26 = sadd.s32 1, %s19
      %p27 = scmp.ge.s32.totalorder %s26, 1
      %s28 = scalar_select %p27, 0, %s26
      %s29 = sadd.s32 1, %s18
      %s30 = scalar_select %p27, %s29, %s18
      %p31 = scmp.ge.s32.totalorder %s30, 1
      %s32 = scalar_select %p31, 0, %s30
      %s33 = sadd.s32 1, %s17
      %s34 = scalar_select %p31, %s33, %s17
      %p35 = scmp.ge.s32.totalorder %s34, 2
      %s36 = scalar_select %p35, 0, %s34
      %s38 = sadd.s32 %s37, 1
      %p41 = scmp.eq.s32.totalorder %s10, 1
      %p42 = scmp.ne.s32.totalorder %s37, %s39
      %p43 = scmp.eq.s32.totalorder %s10, 0
      %p44 = por %p42, %p43
      %p45 = scmp.ne.s32.totalorder %s37, %s39
      %p46 = scmp.eq.s32.totalorder %s15, 1
      %p47 = por %p45, %p46
      %p48 = scmp.ne.s32.totalorder %s39, %s40
      %p49 = scmp.eq.s32.totalorder %s15, 0
      %p50 = por %p48, %p49
      %p51 = scmp.ne.s32.totalorder %s39, %s40
      %p52 = scmp.eq.s32.totalorder %s16, 1
      %p53 = por %p51, %p52
      %p55 = scmp.ne.s32.totalorder %s40, %s54
      %p56 = scmp.eq.s32.totalorder %s16, 0
      %p57 = por %p55, %p56
      %s58 = sadd.s32 %s18, %s19
      %s59 = sadd.s32 %s32, %s28
      %s60 = ssub.s32 %s17, %s36
      %s61 = ssub.s32 %s58, %s59
      %s62 = sor.u32 %s60, %s61
      %p63 = scmp.eq.s32.totalorder %s62, 0
      %s65 = sadd.s32 %s64, 1
      %s66 = scalar_select %p63, %s64, %s65
      %p69 = pneg %p63
      %p70 = scmp.eq.s32.totalorder %s10, 1
      %p71 = por %p69, %p70
      %p72 = scmp.ne.s32.totalorder %s64, %s67
      %p73 = scmp.eq.s32.totalorder %s10, 0
      %p74 = por %p72, %p73
      %p75 = scmp.ne.s32.totalorder %s64, %s67
      %p76 = scmp.eq.s32.totalorder %s15, 1
      %p77 = por %p75, %p76
      %p78 = scmp.ne.s32.totalorder %s67, %s68
      %p79 = scmp.eq.s32.totalorder %s15, 0
      %p80 = por %p78, %p79
      %p81 = scmp.ne.s32.totalorder %s67, %s68
      %p82 = scmp.eq.s32.totalorder %s16, 1
      %p83 = por %p81, %p82
      %p85 = scmp.ne.s32.totalorder %s68, %s84
      %p86 = scmp.eq.s32.totalorder %s16, 0
      %p87 = por %p85, %p86
      %s88 = sadd.s32 %s18, %s19
      %s89 = sadd.s32 %s32, %s28
      %s90 = ssub.s32 %s17, %s36
      %s91 = ssub.s32 %s88, %s89
      %s92 = sor.u32 %s90, %s91
      %p93 = scmp.eq.s32.totalorder %s92, 0
      %s95 = sadd.s32 %s94, 1
      %s96 = scalar_select %p93, %s94, %s95
      %p99 = pneg %p93
      %p100 = scmp.eq.s32.totalorder %s10, 1
      %p101 = por %p99, %p100
      %p102 = scmp.ne.s32.totalorder %s94, %s97
      %p103 = scmp.eq.s32.totalorder %s10, 0
      %p104 = por %p102, %p103
      %p105 = scmp.ne.s32.totalorder %s94, %s97
      %p106 = scmp.eq.s32.totalorder %s15, 1
      %p107 = por %p105, %p106
      %p108 = scmp.ne.s32.totalorder %s97, %s98
      %p109 = scmp.eq.s32.totalorder %s15, 0
      %p110 = por %p108, %p109
      %p111 = scmp.ne.s32.totalorder %s97, %s98
      %p112 = scmp.eq.s32.totalorder %s16, 1
      %p113 = por %p111, %p112
      %p115 = scmp.ne.s32.totalorder %s98, %s114
      %p116 = scmp.eq.s32.totalorder %s16, 0
      %p117 = por %p115, %p116
      %s118 = ssub.s32 %s17, %s36
      %s119 = ssub.s32 %s18, %s32
      %s120 = sor.u32 %s118, %s119
      %p121 = scmp.eq.s32.totalorder %s120, 0
      %s123 = sadd.s32 %s122, 1
      %s124 = scalar_select %p121, %s122, %s123
      %p127 = pneg %p121
      %p128 = scmp.eq.s32.totalorder %s10, 1
      %p129 = por %p127, %p128
      %p130 = scmp.ne.s32.totalorder %s122, %s125
      %p131 = scmp.eq.s32.totalorder %s10, 0
      %p132 = por %p130, %p131
      %p133 = scmp.ne.s32.totalorder %s122, %s125
      %p134 = scmp.eq.s32.totalorder %s15, 1
      %p135 = por %p133, %p134
      %p136 = scmp.ne.s32.totalorder %s125, %s126
      %p137 = scmp.eq.s32.totalorder %s15, 0
      %p138 = por %p136, %p137
      %p139 = scmp.ne.s32.totalorder %s125, %s126
      %p140 = scmp.eq.s32.totalorder %s16, 1
      %p141 = por %p139, %p140
      %p143 = scmp.ne.s32.totalorder %s126, %s142
      %p144 = scmp.eq.s32.totalorder %s16, 0
      %p145 = por %p143, %p144
      %p146 = scmp.le.s32.totalorder 1, %s10
      %p147 = scmp.lt.s32.totalorder %s10, 3
      %p148 = pnand %p146, %p147
      %p149 = pneg %p148
      // Predicated region
      $region9: #{self_training_loss.3} parent=5 // pred_check
        _
      $region10: #{self_training_loss.3} parent=5 // pred_check_branch
        %151 = sbr.rel (%p148) target = $region12
      $region11: #{self_training_loss.3} parent=5 // pred_region
        %s152 = ssub.s32 %s10, 1
        // Predicated region
        $region13: #{self_training_loss.3} parent=11 // pred_check
          %p153 = pneg %p50
        $region14: #{self_training_loss.3} parent=11 // pred_check_branch
          %155 = sbr.rel (%p153) target = $region16
        $region15: #{self_training_loss.3} parent=11 // pred_region
          %s157 = ssub.s32 32, 32
          %158 = vsyncadd [#allocation3], %s157
          %s160 = sshll.u32 %s0, 4
          %s161 = int_to_ptr.vmem [resolvable:$true] %s160
          %163 = dma.vmem_to_smem %s161, 32, [#allocation2], [#allocation3]
        $region16: #{self_training_loss.3} parent=11 // pred_fallthru
          _
      $region12: #{self_training_loss.3} parent=5 // pred_fallthru
        _
      %p164 = scmp.lt.s32.totalorder %s10, 2
      // Predicated region
      $region17: #{self_training_loss.3} parent=5 // pred_check
        %p165 = pneg %p164
      $region18: #{self_training_loss.3} parent=5 // pred_check_branch
        %167 = sbr.rel (%p165) target = $region20
      $region19: #{self_training_loss.3} parent=5 // pred_region
        // Predicated region
        $region21: #{self_training_loss.3} parent=19 // pred_check
          %p168 = pneg %p74
        $region22: #{self_training_loss.3} parent=19 // pred_check_branch
          %170 = sbr.rel (%p168) target = $region24
        $region23: #{self_training_loss.3} parent=19 // pred_region
          %s171 = sadd.s32 %s18, %s19
          %p172 = scmp.lt.s32.totalorder %s17, 1
          %s173 = scalar_select %p172, %s17, 1
          %p174 = scmp.lt.s32.totalorder %s171, 0
          %s175 = scalar_select %p174, %s171, 0
          %s176 = sadd.s32 %s175, %s173
          %s177 = smul.addr %s176, 2
          %s178 = scalar_lea.vmem %s1, %s177
          %s179 = sadd.s32 %s18, %s19
        $region24: #{self_training_loss.3} parent=19 // pred_fallthru
          _
        // Predicated region
        $region25: #{self_training_loss.3} parent=19 // pred_check
          %p180 = pneg %p104
        $region26: #{self_training_loss.3} parent=19 // pred_check_branch
          %182 = sbr.rel (%p180) target = $region28
        $region27: #{self_training_loss.3} parent=19 // pred_region
          %s183 = sadd.s32 %s18, %s19
          %p184 = scmp.lt.s32.totalorder %s17, 1
          %s185 = scalar_select %p184, %s17, 1
          %p186 = scmp.lt.s32.totalorder %s183, 0
          %s187 = scalar_select %p186, %s183, 0
          %s188 = sadd.s32 %s187, %s185
          %s189 = smul.addr %s188, 2
          %s190 = scalar_lea.vmem %s2, %s189
          %s191 = sadd.s32 %s18, %s19
        $region28: #{self_training_loss.3} parent=19 // pred_fallthru
          _
      $region20: #{self_training_loss.3} parent=5 // pred_fallthru
        _
      %p192 = scmp.le.s32.totalorder 1, %s10
      %p193 = scmp.lt.s32.totalorder %s10, 3
      %p194 = pnand %p192, %p193
      %p195 = pneg %p194
      // Predicated region
      $region29: #{self_training_loss.3} parent=5 // pred_check
        _
      $region30: #{self_training_loss.3} parent=5 // pred_check_branch
        %197 = sbr.rel (%p194) target = $region32
      $region31: #{self_training_loss.3} parent=5 // pred_region
        %s198 = ssub.s32 %s10, 1
        // Predicated region
        $region33: #{self_training_loss.3} parent=31 // pred_check
          %p199 = pneg %p50
        $region34: #{self_training_loss.3} parent=31 // pred_check_branch
          %201 = sbr.rel (%p199) target = $region36
        $region35: #{self_training_loss.3} parent=31 // pred_region
          %202 = dma.done [#allocation3], 32
        $region36: #{self_training_loss.3} parent=31 // pred_fallthru
          _
        %203 = sfence
        %p204 = pneg %p50
        %p205 = pneg %p47
        %s206 = sadd.s32 %s21, %s22
        %p207 = scmp.lt.s32.totalorder %s20, 1
        %s208 = scalar_select %p207, %s20, 1
        %p209 = scmp.lt.s32.totalorder %s206, 0
        %s210 = scalar_select %p209, %s206, 0
        %s211 = sadd.s32 %s210, %s208
        %s212 = smul.addr %s211, 2
        %s213 = scalar_lea.vmem %s1, %s212
        %p214 = pneg %p80
        %p215 = pneg %p77
        %s216 = sadd.s32 %s21, %s22
        %p217 = scmp.lt.s32.totalorder %s20, 1
        %s218 = scalar_select %p217, %s20, 1
        %p219 = scmp.lt.s32.totalorder %s216, 0
        %s220 = scalar_select %p219, %s216, 0
        %s221 = sadd.s32 %s220, %s218
        %s222 = smul.addr %s221, 2
        %s223 = scalar_lea.vmem %s2, %s222
        %p224 = pneg %p110
        %p225 = pneg %p107
        %p226 = pneg %p138
        %p227 = pneg %p135
        %p228 = scmp.lt.s32.totalorder %s20, 1
        %s229 = scalar_select %p228, %s20, 1
        %p230 = scmp.lt.s32.totalorder %s21, 0
        %s231 = scalar_select %p230, %s21, 0
        %s232 = sadd.s32 %s231, %s229
        %s233 = scalar_lea.vmem %s3, %s232
        %s234 = sadd.s32 %s21, %s22
        %p235 = scmp.lt.s32.totalorder %s20, 1
        %s236 = scalar_select %p235, %s20, 1
        %p237 = scmp.lt.s32.totalorder %s234, 0
        %s238 = scalar_select %p237, %s234, 0
        %s239 = sadd.s32 %s238, %s236
        %s240 = smul.addr %s239, 2
        %s241 = scalar_lea.vmem %s1, %s240
        %s242 = sadd.s32 %s21, %s22
        %s243 = sadd.s32 %s21, %s22
        %p244 = scmp.lt.s32.totalorder %s20, 1
        %s245 = scalar_select %p244, %s20, 1
        %p246 = scmp.lt.s32.totalorder %s243, 0
        %s247 = scalar_select %p246, %s243, 0
        %s248 = sadd.s32 %s247, %s245
        %s249 = smul.addr %s248, 2
        %s250 = scalar_lea.vmem %s2, %s249
        %s251 = sadd.s32 %s21, %s22
        %p252 = scmp.lt.s32.totalorder %s20, 1
        %s253 = scalar_select %p252, %s20, 1
        %p254 = scmp.lt.s32.totalorder %s21, 0
        %s255 = scalar_select %p254, %s21, 0
        %s256 = sadd.s32 %s255, %s253
        %s257 = scalar_lea.vmem %s3, %s256
        %p258 = scmp.eq.s32.totalorder %s22, 0
        // Predicated region
        $region37: #{self_training_loss.3} parent=31 // pred_check
          %p259 = pneg %p258
        $region38: #{self_training_loss.3} parent=31 // pred_check_branch
          %261 = sbr.rel (%p259) target = $region40
        $region39: #{self_training_loss.3} parent=31 // pred_region
          %262 = vst [vmem:[%s257] sm:$0x1] 0.0
        $region40: #{self_training_loss.3} parent=31 // pred_fallthru
          _
        %v263 = vld [vmem:[%s241] sm:$0x3]
        %v264 = vld [vmem:[%s250] sm:$0x3]
        %vm265 = vcmp.eq.s32.totalorder %v264, 0
        %s266 = smul.u32 %s20, 128
        %s267 = sld [smem:[#allocation2 + %s266]]
        %v268 = vstv %s267
        %v269 = vsel %vm265, %v268, -1.0
        %vm270 = vcmp.eq.s32.totalorder %v264, 1
        %s271 = sadd.s32 %s266, 1
        %s272 = sld [smem:[#allocation2 + %s271]]
        %v273 = vstv %s272
        %v274 = vsel %vm270, %v273, %v269
        %vm275 = vcmp.eq.s32.totalorder %v264, 2
        %s276 = sadd.s32 %s266, 2
        %s277 = sld [smem:[#allocation2 + %s276]]
        %v278 = vstv %s277
        %v279 = vsel %vm275, %v278, %v274
        %vm280 = vcmp.eq.s32.totalorder %v264, 3
        %s281 = sadd.s32 %s266, 3
        %s282 = sld [smem:[#allocation2 + %s281]]
        %v283 = vstv %s282
        %v284 = vsel %vm280, %v283, %v279
        %vm285 = vcmp.lt.f32.partialorder %v263, 0.105360515
        %vm286 = vcmp.le.f32.partialorder %v263, %v284
        %vm287 = vmor %vm285, %vm286
        %v288 = vsel %vm287, %v263, 0.0
        %v289 = vld [vmem:[%s257] sm:$0x1]
        %vm290 = vcmask 1041408
        %v291 = vsel %vm290, %v288, 0.0
        %v292 = vrot.slane %v291, 4
        %v293 = vadd.f32 %v291, %v292
        %v294 = vrot.slane %v293, 2
        %v295 = vadd.f32 %v293, %v294
        %v296 = vrot.slane %v295, 1
        %v297 = vadd.f32 %v295, %v296
        %v298 = vadd.f32 %v289, %v297
        %299 = vst [vmem:[%s257] sm:$0x1] %v298
        %p300 = scmp.lt.s32.totalorder %s20, 1
        %s301 = scalar_select %p300, %s20, 1
        %p302 = scmp.lt.s32.totalorder %s21, 0
        %s303 = scalar_select %p302, %s21, 0
        %s304 = sadd.s32 %s303, %s301
        %s305 = scalar_lea.vmem %s3, %s304
        // Predicated region
        $region41: #{self_training_loss.3} parent=31 // pred_check
          %p306 = pneg %p135
        $region42: #{self_training_loss.3} parent=31 // pred_check_branch
          %308 = sbr.rel (%p306) target = $region44
        $region43: #{self_training_loss.3} parent=31 // pred_region
          _
        $region44: #{self_training_loss.3} parent=31 // pred_fallthru
          _
      $region32: #{self_training_loss.3} parent=5 // pred_fallthru
        _
      %p309 = scmp.le.s32.totalorder 2, %s10
      // Predicated region
      $region45: #{self_training_loss.3} parent=5 // pred_check
        %p310 = pneg %p309
      $region46: #{self_training_loss.3} parent=5 // pred_check_branch
        %312 = sbr.rel (%p310) target = $region48
      $region47: #{self_training_loss.3} parent=5 // pred_region
        %s313 = ssub.s32 %s10, 2
        // Predicated region
        $region49: #{self_training_loss.3} parent=47 // pred_check
          %p314 = pneg %p141
        $region50: #{self_training_loss.3} parent=47 // pred_check_branch
          %316 = sbr.rel (%p314) target = $region52
        $region51: #{self_training_loss.3} parent=47 // pred_region
          %p317 = scmp.lt.s32.totalorder %s23, 1
          %s318 = scalar_select %p317, %s23, 1
          %p319 = scmp.lt.s32.totalorder %s24, 0
          %s320 = scalar_select %p319, %s24, 0
          %s321 = sadd.s32 %s320, %s318
          %s322 = scalar_lea.vmem %s3, %s321
        $region52: #{self_training_loss.3} parent=47 // pred_fallthru
          _
      $region48: #{self_training_loss.3} parent=5 // pred_fallthru
        _
    $region6: #{self_training_loss.3} parent=1 // loop_footer
      %s14 = sadd.s32 1, %s10
    $region7: #{self_training_loss.3} parent=1 // loop_footer_branch
      %9 = sbr.rel target = $region3
    $region8: #{self_training_loss.3} parent=1 // loop_exit
      _
    %323 = vsyncpa [#allocation3], 1
    %s324 = scalar_lea.sflag [#allocation3], 1
    %325 = vsyncpa %s324, 1

</llo_original>
